<compile_context>
chip_gen: v6e
topology: v6e:2x2x1
jax: 0.10.0
libtpu: 0.0.40
codegen_flags: <defaults>
</compile_context>

<pallas_src>
import functools

import jax
import jax.numpy as jnp
from jax.experimental import pallas as pl
from jax.experimental.pallas import tpu as pltpu


def _emo_kernel(*refs, dropout_p, train):
    if train:
        (sen_ref, prev_ref, u_ref, w1a_ref, w1b_ref, b1_ref, w2_ref, b2_ref,
         outp_ref, prob_ref) = refs
    else:
        (sen_ref, prev_ref, w1a_ref, w1b_ref, b1_ref, w2_ref, b2_ref,
         outp_ref, prob_ref) = refs

    # hid2state: the concat is fused away as two matmuls (f32 accumulation).
    h = (jnp.dot(sen_ref[...], w1a_ref[...], preferred_element_type=jnp.float32)
         + jnp.dot(prev_ref[...], w1b_ref[...], preferred_element_type=jnp.float32)
         + b1_ref[...])
    h = jnp.tanh(h)

    # Inverted-scaling dropout (matches F.dropout): keep iff u >= p,
    # scale kept values by 1/(1-p).  Single compare + select + multiply.
    if train:
        inv_keep = 0.0 if dropout_p >= 1.0 else 1.0 / (1.0 - dropout_p)
        keep_scale = jnp.where(u_ref[...] >= jnp.float32(dropout_p),
                               jnp.float32(inv_keep), jnp.float32(0.0))
        h = h * keep_scale

    outp_ref[...] = h

    # state2prob + softmax along the feature axis.
    logits = (jnp.dot(h.astype(w2_ref.dtype), w2_ref[...],
                      preferred_element_type=jnp.float32) + b2_ref[...])
    m = jnp.max(logits, axis=1, keepdims=True)
    e = jnp.exp(logits - m)
    prob_ref[...] = e * pl.reciprocal(jnp.sum(e, axis=1, keepdims=True),
                                      approx=True)


def _pick_tile_b(B, max_tile=512):
    """Batch tile: as large as reasonable (HBM-roofline), (8,·)-aligned."""
    if B <= max_tile:
        return B            # block == full dim is always a legal block shape
    return max_tile         # multiple of 8; last block may be partial


def emo_forward(sen_vec, prev_state_vec, params, training, dropout,
                rng_key=None, tile_b=None):
    """Pallas implementation of EmoModel.forward.

    sen_vec:        (B, hiddendim) float32
    prev_state_vec: (B, statedim)  float32
    returns (outp (B, statedim) f32, prob (B, elnum) f32)
    """
    B, H = sen_vec.shape
    S = params["w1b"].shape[0]
    E = params["w2"].shape[1]

    bf = jnp.bfloat16
    sen_b = sen_vec.astype(bf)
    prev_b = prev_state_vec.astype(bf)
    w1a = params["w1a"].astype(bf)
    w1b = params["w1b"].astype(bf)
    w2 = params["w2"].astype(bf)
    b1 = params["b1"].astype(jnp.float32)
    b2 = params["b2"].astype(jnp.float32)

    train = bool(training) and float(dropout) > 0.0
    tb = _pick_tile_b(B) if tile_b is None else int(tile_b)
    grid = (pl.cdiv(B, tb),)

    def row_spec(feat):                       # batch-tiled activations
        return pl.BlockSpec((tb, feat), lambda i: (i, 0))

    def resident_spec(r, c):                  # weights: constant block index
        return pl.BlockSpec((r, c), lambda i: (0, 0))

    in_specs = [row_spec(H), row_spec(S)]
    inputs = [sen_b, prev_b]
    if train:
        if rng_key is None:
            rng_key = jax.random.PRNGKey(0)
        u = jax.random.uniform(rng_key, (B, S), jnp.float32)
        in_specs.append(row_spec(S))
        inputs.append(u)
    in_specs += [resident_spec(H, S), resident_spec(S, S), resident_spec(1, S),
                 resident_spec(S, E), resident_spec(1, E)]
    inputs += [w1a, w1b, b1, w2, b2]

    kernel = functools.partial(_emo_kernel, dropout_p=float(dropout),
                               train=train)

    outp, prob = pl.pallas_call(
        kernel,
        grid=grid,
        in_specs=in_specs,
        out_specs=(row_spec(S), row_spec(E)),
        out_shape=(jax.ShapeDtypeStruct((B, S), jnp.float32),
                   jax.ShapeDtypeStruct((B, E), jnp.float32)),
        compiler_params=pltpu.CompilerParams(
            dimension_semantics=("parallel",)),
    )(*inputs)
    return outp, prob


def init_params(hiddendim, statedim, elnum, key):
    """Parameter init mirroring nn.Linear, with hid2state's weight split and
    stored as (in, out) so the kernel computes x @ W directly."""
    k1, k2, k3, k4, k5 = jax.random.split(key, 5)
    in1 = hiddendim + statedim
    bound1 = 1.0 / float(in1) ** 0.5
    bound2 = 1.0 / float(statedim) ** 0.5
    return {
        "w1a": jax.random.uniform(k1, (hiddendim, statedim), jnp.float32,
                                  -bound1, bound1),
        "w1b": jax.random.uniform(k2, (statedim, statedim), jnp.float32,
                                  -bound1, bound1),
        "b1": jax.random.uniform(k3, (1, statedim), jnp.float32,
                                 -bound1, bound1),
        "w2": jax.random.uniform(k4, (statedim, elnum), jnp.float32,
                                 -bound2, bound2),
        "b2": jax.random.uniform(k5, (1, elnum), jnp.float32,
                                 -bound2, bound2),
    }


def _reference(sen, prev, params, training, dropout, u=None):
    """Pure-JAX reference using the same bf16 matmul operands as the kernel."""
    bf = jnp.bfloat16
    h = (jnp.dot(sen.astype(bf), params["w1a"].astype(bf),
                 preferred_element_type=jnp.float32)
         + jnp.dot(prev.astype(bf), params["w1b"].astype(bf),
                   preferred_element_type=jnp.float32)
         + params["b1"])
    h = jnp.tanh(h)
    if training and dropout > 0.0:
        h = h * jnp.where(u >= dropout, 1.0 / (1.0 - dropout), 0.0)
    logits = (jnp.dot(h.astype(bf), params["w2"].astype(bf),
                      preferred_element_type=jnp.float32) + params["b2"])
    return h, jax.nn.softmax(logits, axis=1)


if __name__ == "__main__":
    B, hiddendim, statedim, elnum = 16, 32, 16, 8
    tile_b = 8  # 2 grid steps -> exercises pipelining / per-tile dropout slices

    key = jax.random.PRNGKey(0)
    kp, kx, ks = jax.random.split(key, 3)
    params = init_params(hiddendim, statedim, elnum, kp)
    sen_vec = jax.random.normal(kx, (B, hiddendim), jnp.float32)
    prev_state_vec = jax.random.normal(ks, (B, statedim), jnp.float32)

    # eval path (dropout inactive)
    outp, prob = emo_forward(sen_vec, prev_state_vec, params,
                             training=False, dropout=0.5, tile_b=tile_b)
    jax.block_until_ready((outp, prob))
    ref_outp, ref_prob = _reference(sen_vec, prev_state_vec, params,
                                    training=False, dropout=0.5)
    assert jnp.allclose(outp, ref_outp, atol=1e-4, rtol=1e-4)
    assert jnp.allclose(prob, ref_prob, atol=3e-3, rtol=3e-3)
    assert jnp.allclose(jnp.sum(prob, axis=1), 1.0, atol=3e-3)

    # training path (dropout active, mask from a wrapper-generated key)
    drop_key = jax.random.PRNGKey(42)
    outp_t, prob_t = emo_forward(sen_vec, prev_state_vec, params,
                                 training=True, dropout=0.5,
                                 rng_key=drop_key, tile_b=tile_b)
    jax.block_until_ready((outp_t, prob_t))
    u = jax.random.uniform(drop_key, (B, statedim), jnp.float32)
    ref_outp_t, ref_prob_t = _reference(sen_vec, prev_state_vec, params,
                                        training=True, dropout=0.5, u=u)
    assert jnp.allclose(outp_t, ref_outp_t, atol=2e-3, rtol=2e-3)
    assert jnp.allclose(prob_t, ref_prob_t, atol=3e-3, rtol=3e-3)
    assert jnp.allclose(jnp.sum(prob_t, axis=1), 1.0, atol=3e-3)
    assert int(jnp.sum(outp_t == 0.0)) > 0  # dropout actually dropped entries

    print("KERNEL_OK")
</pallas_src>

<mosaic_0001>
module attributes {stable_mosaic.version = 11 : i64} {
  func.func @_emo_kernel(%arg0: i32, %arg1: memref<8x32xbf16, #tpu.memory_space<vmem>>, %arg2: memref<8x16xbf16, #tpu.memory_space<vmem>>, %arg3: memref<32x16xbf16, #tpu.memory_space<vmem>>, %arg4: memref<16x16xbf16, #tpu.memory_space<vmem>>, %arg5: memref<1x16xf32, #tpu.memory_space<vmem>>, %arg6: memref<16x8xbf16, #tpu.memory_space<vmem>>, %arg7: memref<1x8xf32, #tpu.memory_space<vmem>>, %arg8: memref<8x16xf32, #tpu.memory_space<vmem>>, %arg9: memref<8x8xf32, #tpu.memory_space<vmem>>) attributes {dimension_semantics = [#tpu.dimension_semantics<parallel>], iteration_bounds = array<i64: 2>, scalar_prefetch = 0 : i64, scratch_operands = 0 : i64, tpu.core_type = #tpu.core_type<tc>, window_params = [{transform_indices = @transform_0, window_bounds = array<i64: 8, 32>}, {transform_indices = @transform_1, window_bounds = array<i64: 8, 16>}, {pipeline_mode = #tpu.pipeline_mode<synchronous>, transform_indices = @transform_2, window_bounds = array<i64: 32, 16>}, {pipeline_mode = #tpu.pipeline_mode<synchronous>, transform_indices = @transform_3, window_bounds = array<i64: 16, 16>}, {pipeline_mode = #tpu.pipeline_mode<synchronous>, transform_indices = @transform_4, window_bounds = array<i64: 1, 16>}, {pipeline_mode = #tpu.pipeline_mode<synchronous>, transform_indices = @transform_5, window_bounds = array<i64: 16, 8>}, {pipeline_mode = #tpu.pipeline_mode<synchronous>, transform_indices = @transform_6, window_bounds = array<i64: 1, 8>}, {transform_indices = @transform_7, window_bounds = array<i64: 8, 16>}, {transform_indices = @transform_8, window_bounds = array<i64: 8, 8>}]} {
    %c0 = arith.constant 0 : index
    %c0_0 = arith.constant 0 : index
    %0 = vector.load %arg1[%c0, %c0_0] : memref<8x32xbf16, #tpu.memory_space<vmem>>, vector<8x32xbf16>
    %c0_1 = arith.constant 0 : index
    %c0_2 = arith.constant 0 : index
    %1 = vector.load %arg3[%c0_1, %c0_2] : memref<32x16xbf16, #tpu.memory_space<vmem>>, vector<32x16xbf16>
    %cst = arith.constant dense<0.000000e+00> : vector<8x16xf32>
    %2 = tpu.matmul %0, %1, %cst {dimension_numbers = #tpu.dot_dimension_numbers<[1], [0], [0], [1], [0, 0, 1, 1], [], []>} : vector<8x32xbf16>, vector<32x16xbf16>, vector<8x16xf32> -> vector<8x16xf32>
    %c0_3 = arith.constant 0 : index
    %c0_4 = arith.constant 0 : index
    %3 = vector.load %arg2[%c0_3, %c0_4] : memref<8x16xbf16, #tpu.memory_space<vmem>>, vector<8x16xbf16>
    %c0_5 = arith.constant 0 : index
    %c0_6 = arith.constant 0 : index
    %4 = vector.load %arg4[%c0_5, %c0_6] : memref<16x16xbf16, #tpu.memory_space<vmem>>, vector<16x16xbf16>
    %cst_7 = arith.constant dense<0.000000e+00> : vector<8x16xf32>
    %5 = tpu.matmul %3, %4, %cst_7 {dimension_numbers = #tpu.dot_dimension_numbers<[1], [0], [0], [1], [0, 0, 1, 1], [], []>} : vector<8x16xbf16>, vector<16x16xbf16>, vector<8x16xf32> -> vector<8x16xf32>
    %6 = arith.addf %2, %5 : vector<8x16xf32>
    %c0_8 = arith.constant 0 : index
    %c0_9 = arith.constant 0 : index
    %7 = vector.load %arg5[%c0_8, %c0_9] : memref<1x16xf32, #tpu.memory_space<vmem>>, vector<1x16xf32>
    %8 = vector.broadcast %7 : vector<1x16xf32> to vector<8x16xf32>
    %9 = arith.addf %6, %8 : vector<8x16xf32>
    %10 = math.tanh %9 : vector<8x16xf32>
    %c0_10 = arith.constant 0 : index
    %c0_11 = arith.constant 0 : index
    %11 = vector.load %arg8[%c0_10, %c0_11] : memref<8x16xf32, #tpu.memory_space<vmem>>, vector<8x16xf32>
    tpu.vector_store %arg8[%c0_10, %c0_11], %10 {strides = array<i32>} : memref<8x16xf32, #tpu.memory_space<vmem>>, vector<8x16xf32>,
    %12 = arith.truncf %10 : vector<8x16xf32> to vector<8x16xbf16>
    %c0_12 = arith.constant 0 : index
    %c0_13 = arith.constant 0 : index
    %13 = vector.load %arg6[%c0_12, %c0_13] : memref<16x8xbf16, #tpu.memory_space<vmem>>, vector<16x8xbf16>
    %cst_14 = arith.constant dense<0.000000e+00> : vector<8x8xf32>
    %14 = tpu.matmul %12, %13, %cst_14 {dimension_numbers = #tpu.dot_dimension_numbers<[1], [0], [0], [1], [0, 0, 1, 1], [], []>} : vector<8x16xbf16>, vector<16x8xbf16>, vector<8x8xf32> -> vector<8x8xf32>
    %c0_15 = arith.constant 0 : index
    %c0_16 = arith.constant 0 : index
    %15 = vector.load %arg7[%c0_15, %c0_16] : memref<1x8xf32, #tpu.memory_space<vmem>>, vector<1x8xf32>
    %16 = vector.broadcast %15 : vector<1x8xf32> to vector<8x8xf32>
    %17 = arith.addf %14, %16 : vector<8x8xf32>
    %cst_17 = arith.constant dense<0xFF800000> : vector<8xf32>
    %18 = vector.multi_reduction <maximumf>, %17, %cst_17 [1] : vector<8x8xf32> to vector<8xf32>
    %19 = vector.shape_cast %18 : vector<8xf32> to vector<8x1xf32>
    %20 = vector.broadcast %19 : vector<8x1xf32> to vector<8x8xf32>
    %21 = arith.subf %17, %20 : vector<8x8xf32>
    %22 = math.exp %21 : vector<8x8xf32>
    %cst_18 = arith.constant dense<0.000000e+00> : vector<8xf32>
    %23 = vector.multi_reduction <add>, %22, %cst_18 [1] : vector<8x8xf32> to vector<8xf32>
    %24 = vector.shape_cast %23 : vector<8xf32> to vector<8x1xf32>
    %25 = tpu.reciprocal %24 {approx = true} : vector<8x1xf32> -> vector<8x1xf32>
    %26 = vector.broadcast %25 : vector<8x1xf32> to vector<8x8xf32>
    %27 = arith.mulf %22, %26 : vector<8x8xf32>
    %c0_19 = arith.constant 0 : index
    %c0_20 = arith.constant 0 : index
    %28 = vector.load %arg9[%c0_19, %c0_20] : memref<8x8xf32, #tpu.memory_space<vmem>>, vector<8x8xf32>
    tpu.vector_store %arg9[%c0_19, %c0_20], %27 {strides = array<i32>} : memref<8x8xf32, #tpu.memory_space<vmem>>, vector<8x8xf32>,
    return
  }
  func.func @transform_0(%arg0: i32) -> (i32, i32) {
    %c0_i32 = arith.constant 0 : i32
    %c0_i32_0 = arith.constant 0 : i32
    return %arg0, %c0_i32 : i32, i32
  }
  func.func @transform_1(%arg0: i32) -> (i32, i32) {
    %c0_i32 = arith.constant 0 : i32
    %c0_i32_0 = arith.constant 0 : i32
    return %arg0, %c0_i32 : i32, i32
  }
  func.func @transform_2(%arg0: i32) -> (i32, i32) {
    %c0_i32 = arith.constant 0 : i32
    %c0_i32_0 = arith.constant 0 : i32
    %c0_i32_1 = arith.constant 0 : i32
    return %c0_i32, %c0_i32_0 : i32, i32
  }
  func.func @transform_3(%arg0: i32) -> (i32, i32) {
    %c0_i32 = arith.constant 0 : i32
    %c0_i32_0 = arith.constant 0 : i32
    %c0_i32_1 = arith.constant 0 : i32
    return %c0_i32, %c0_i32_0 : i32, i32
  }
  func.func @transform_4(%arg0: i32) -> (i32, i32) {
    %c0_i32 = arith.constant 0 : i32
    %c0_i32_0 = arith.constant 0 : i32
    %c0_i32_1 = arith.constant 0 : i32
    return %c0_i32, %c0_i32_0 : i32, i32
  }
  func.func @transform_5(%arg0: i32) -> (i32, i32) {
    %c0_i32 = arith.constant 0 : i32
    %c0_i32_0 = arith.constant 0 : i32
    %c0_i32_1 = arith.constant 0 : i32
    return %c0_i32, %c0_i32_0 : i32, i32
  }
  func.func @transform_6(%arg0: i32) -> (i32, i32) {
    %c0_i32 = arith.constant 0 : i32
    %c0_i32_0 = arith.constant 0 : i32
    %c0_i32_1 = arith.constant 0 : i32
    return %c0_i32, %c0_i32_0 : i32, i32
  }
  func.func @transform_7(%arg0: i32) -> (i32, i32) {
    %c0_i32 = arith.constant 0 : i32
    %c0_i32_0 = arith.constant 0 : i32
    return %arg0, %c0_i32 : i32, i32
  }
  func.func @transform_8(%arg0: i32) -> (i32, i32) {
    %c0_i32 = arith.constant 0 : i32
    %c0_i32_0 = arith.constant 0 : i32
    return %arg0, %c0_i32 : i32, i32
  }
}

</mosaic_0001>

<llo_original>
// kernel: tpu_custom_call.1
$region0: #{tpu_custom_call.1}
  #allocation0 [shape = 'u32[]', space=smem, size = 0x4, offset = 0x4, fixed_abs, tag = 'smem constant byte address 0x4 - core index']
  #allocation1 [shape = 'u32[144,128]{1,0:T(1,128)}', space=vmem, size = 0x12000, scoped, tag = 'internal scratch']
  %s0 = inlined_call_operand.vmem [shape: bf16[16,32], index: 0, kind: input, shape index: {}]
  %s1 = inlined_call_operand.vmem [shape: bf16[16,16], index: 1, kind: input, shape index: {}]
  %s2 = inlined_call_operand.vmem [shape: bf16[32,16], index: 2, kind: input, shape index: {}]
  %s3 = inlined_call_operand.vmem [shape: bf16[16,16], index: 3, kind: input, shape index: {}]
  %s4 = inlined_call_operand.vmem [shape: f32[1,16], index: 4, kind: input, shape index: {}]
  %s5 = inlined_call_operand.vmem [shape: bf16[16,8], index: 5, kind: input, shape index: {}]
  %s6 = inlined_call_operand.vmem [shape: f32[1,8], index: 6, kind: input, shape index: {}]
  %s7 = inlined_call_operand.hbm [shape: f32[16,16], index: 7, kind: output, shape index: {0}]
  %s8 = inlined_call_operand.vmem [shape: f32[16,8], index: 8, kind: output, shape index: {1}]
  %9 = xla_tuple %s7, %s8
  %s10 = sld [smem:[#allocation0]]
  $region69: #{tpu_custom_call.1} parent=0
    _
  %s12 = ssub.s32 1, %s10
  %s13 = scalar_select 0, %s12, %s10
  $region1: #{tpu_custom_call.1} parent=0
    #allocation2 [shape = 'u8[8192]{0}', space=vmem, size = 0x2000, scoped, tag = 'output window, operand 0']
    #allocation3 [shape = 's32[2]{0}', space=sflag, size = 0x8, scoped, tag = 'scoped memory for tpu_custom_call.1']
    %14 = vsyncpa [#allocation3], 0
    %s15 = scalar_lea.sflag [#allocation3], 1
    %16 = vsyncpa %s15, 0
    loop: start=0, step=1, limit=4
    $region2: #{tpu_custom_call.1} parent=1 // loop_pre_header
      _
    $region3: #{tpu_custom_call.1} parent=1 // loop_header
      %s18 = sphi 0, %s22
      %p19 = scmp.ge.s32.totalorder %s18, 4
      %s28 = sphi 0, %s30
      %s31 = sphi 0, %s28
      %s32 = sphi 0, %s31
      %s48 = sphi 0, %s32
      %s54 = sphi 0, %s56
      %s57 = sphi 0, %s54
      %s58 = sphi 0, %s57
      %s74 = sphi 0, %s58
      %s78 = sphi 0, %s78
      %s80 = sphi 0, %s78
      %s81 = sphi 0, %s80
      %s95 = sphi 0, %s81
      %s99 = sphi 0, %s99
      %s101 = sphi 0, %s99
      %s102 = sphi 0, %s101
      %s116 = sphi 0, %s102
      %s120 = sphi 0, %s120
      %s122 = sphi 0, %s120
      %s123 = sphi 0, %s122
      %s137 = sphi 0, %s123
      %s141 = sphi 0, %s141
      %s143 = sphi 0, %s141
      %s144 = sphi 0, %s143
      %s158 = sphi 0, %s144
      %s162 = sphi 0, %s162
      %s164 = sphi 0, %s162
      %s165 = sphi 0, %s164
      %s179 = sphi 0, %s165
      %s185 = sphi 0, %s187
      %s188 = sphi 0, %s185
      %s189 = sphi 0, %s188
      %s205 = sphi 0, %s189
      %s211 = sphi 0, %s213
      %s214 = sphi 0, %s211
      %s215 = sphi 0, %s214
      %s231 = sphi 0, %s215
    $region4: #{tpu_custom_call.1} parent=1 // loop_header_branch
      %21 = sbr.rel (%p19) target = $region8
    $region5: #{tpu_custom_call.1} parent=1 // loop_body
      %s23 = ssub.s32 %s18, 1
      %s24 = ssub.s32 %s18, 2
      %s25 = sadd.s32 %s18, 1
      %s26 = ssub.s32 %s18, %s25
      %p27 = scmp.eq.s32.totalorder %s26, 0
      %s29 = sadd.s32 %s28, 1
      %s30 = scalar_select %p27, %s28, %s29
      %p33 = pneg %p27
      %p34 = scmp.eq.s32.totalorder %s18, 1
      %p35 = por %p33, %p34
      %p36 = scmp.ne.s32.totalorder %s28, %s31
      %p37 = scmp.eq.s32.totalorder %s18, 0
      %p38 = por %p36, %p37
      %p39 = scmp.ne.s32.totalorder %s28, %s31
      %p40 = scmp.eq.s32.totalorder %s23, 1
      %p41 = por %p39, %p40
      %p42 = scmp.ne.s32.totalorder %s31, %s32
      %p43 = scmp.eq.s32.totalorder %s23, 0
      %p44 = por %p42, %p43
      %p45 = scmp.ne.s32.totalorder %s31, %s32
      %p46 = scmp.eq.s32.totalorder %s24, 1
      %p47 = por %p45, %p46
      %p49 = scmp.ne.s32.totalorder %s32, %s48
      %p50 = scmp.eq.s32.totalorder %s24, 0
      %p51 = por %p49, %p50
      %s52 = ssub.s32 %s18, %s25
      %p53 = scmp.eq.s32.totalorder %s52, 0
      %s55 = sadd.s32 %s54, 1
      %s56 = scalar_select %p53, %s54, %s55
      %p59 = pneg %p53
      %p60 = scmp.eq.s32.totalorder %s18, 1
      %p61 = por %p59, %p60
      %p62 = scmp.ne.s32.totalorder %s54, %s57
      %p63 = scmp.eq.s32.totalorder %s18, 0
      %p64 = por %p62, %p63
      %p65 = scmp.ne.s32.totalorder %s54, %s57
      %p66 = scmp.eq.s32.totalorder %s23, 1
      %p67 = por %p65, %p66
      %p68 = scmp.ne.s32.totalorder %s57, %s58
      %p69 = scmp.eq.s32.totalorder %s23, 0
      %p70 = por %p68, %p69
      %p71 = scmp.ne.s32.totalorder %s57, %s58
      %p72 = scmp.eq.s32.totalorder %s24, 1
      %p73 = por %p71, %p72
      %p75 = scmp.ne.s32.totalorder %s58, %s74
      %p76 = scmp.eq.s32.totalorder %s24, 0
      %p77 = por %p75, %p76
      %s79 = sadd.s32 %s78, 1
      %p82 = scmp.eq.s32.totalorder %s18, 1
      %p83 = scmp.ne.s32.totalorder %s78, %s80
      %p84 = scmp.eq.s32.totalorder %s18, 0
      %p85 = por %p83, %p84
      %p86 = scmp.ne.s32.totalorder %s78, %s80
      %p87 = scmp.eq.s32.totalorder %s23, 1
      %p88 = por %p86, %p87
      %p89 = scmp.ne.s32.totalorder %s80, %s81
      %p90 = scmp.eq.s32.totalorder %s23, 0
      %p91 = por %p89, %p90
      %p92 = scmp.ne.s32.totalorder %s80, %s81
      %p93 = scmp.eq.s32.totalorder %s24, 1
      %p94 = por %p92, %p93
      %p96 = scmp.ne.s32.totalorder %s81, %s95
      %p97 = scmp.eq.s32.totalorder %s24, 0
      %p98 = por %p96, %p97
      %s100 = sadd.s32 %s99, 1
      %p103 = scmp.eq.s32.totalorder %s18, 1
      %p104 = scmp.ne.s32.totalorder %s99, %s101
      %p105 = scmp.eq.s32.totalorder %s18, 0
      %p106 = por %p104, %p105
      %p107 = scmp.ne.s32.totalorder %s99, %s101
      %p108 = scmp.eq.s32.totalorder %s23, 1
      %p109 = por %p107, %p108
      %p110 = scmp.ne.s32.totalorder %s101, %s102
      %p111 = scmp.eq.s32.totalorder %s23, 0
      %p112 = por %p110, %p111
      %p113 = scmp.ne.s32.totalorder %s101, %s102
      %p114 = scmp.eq.s32.totalorder %s24, 1
      %p115 = por %p113, %p114
      %p117 = scmp.ne.s32.totalorder %s102, %s116
      %p118 = scmp.eq.s32.totalorder %s24, 0
      %p119 = por %p117, %p118
      %s121 = sadd.s32 %s120, 1
      %p124 = scmp.eq.s32.totalorder %s18, 1
      %p125 = scmp.ne.s32.totalorder %s120, %s122
      %p126 = scmp.eq.s32.totalorder %s18, 0
      %p127 = por %p125, %p126
      %p128 = scmp.ne.s32.totalorder %s120, %s122
      %p129 = scmp.eq.s32.totalorder %s23, 1
      %p130 = por %p128, %p129
      %p131 = scmp.ne.s32.totalorder %s122, %s123
      %p132 = scmp.eq.s32.totalorder %s23, 0
      %p133 = por %p131, %p132
      %p134 = scmp.ne.s32.totalorder %s122, %s123
      %p135 = scmp.eq.s32.totalorder %s24, 1
      %p136 = por %p134, %p135
      %p138 = scmp.ne.s32.totalorder %s123, %s137
      %p139 = scmp.eq.s32.totalorder %s24, 0
      %p140 = por %p138, %p139
      %s142 = sadd.s32 %s141, 1
      %p145 = scmp.eq.s32.totalorder %s18, 1
      %p146 = scmp.ne.s32.totalorder %s141, %s143
      %p147 = scmp.eq.s32.totalorder %s18, 0
      %p148 = por %p146, %p147
      %p149 = scmp.ne.s32.totalorder %s141, %s143
      %p150 = scmp.eq.s32.totalorder %s23, 1
      %p151 = por %p149, %p150
      %p152 = scmp.ne.s32.totalorder %s143, %s144
      %p153 = scmp.eq.s32.totalorder %s23, 0
      %p154 = por %p152, %p153
      %p155 = scmp.ne.s32.totalorder %s143, %s144
      %p156 = scmp.eq.s32.totalorder %s24, 1
      %p157 = por %p155, %p156
      %p159 = scmp.ne.s32.totalorder %s144, %s158
      %p160 = scmp.eq.s32.totalorder %s24, 0
      %p161 = por %p159, %p160
      %s163 = sadd.s32 %s162, 1
      %p166 = scmp.eq.s32.totalorder %s18, 1
      %p167 = scmp.ne.s32.totalorder %s162, %s164
      %p168 = scmp.eq.s32.totalorder %s18, 0
      %p169 = por %p167, %p168
      %p170 = scmp.ne.s32.totalorder %s162, %s164
      %p171 = scmp.eq.s32.totalorder %s23, 1
      %p172 = por %p170, %p171
      %p173 = scmp.ne.s32.totalorder %s164, %s165
      %p174 = scmp.eq.s32.totalorder %s23, 0
      %p175 = por %p173, %p174
      %p176 = scmp.ne.s32.totalorder %s164, %s165
      %p177 = scmp.eq.s32.totalorder %s24, 1
      %p178 = por %p176, %p177
      %p180 = scmp.ne.s32.totalorder %s165, %s179
      %p181 = scmp.eq.s32.totalorder %s24, 0
      %p182 = por %p180, %p181
      %s183 = ssub.s32 %s18, %s25
      %p184 = scmp.eq.s32.totalorder %s183, 0
      %s186 = sadd.s32 %s185, 1
      %s187 = scalar_select %p184, %s185, %s186
      %p190 = pneg %p184
      %p191 = scmp.eq.s32.totalorder %s18, 1
      %p192 = por %p190, %p191
      %p193 = scmp.ne.s32.totalorder %s185, %s188
      %p194 = scmp.eq.s32.totalorder %s18, 0
      %p195 = por %p193, %p194
      %p196 = scmp.ne.s32.totalorder %s185, %s188
      %p197 = scmp.eq.s32.totalorder %s23, 1
      %p198 = por %p196, %p197
      %p199 = scmp.ne.s32.totalorder %s188, %s189
      %p200 = scmp.eq.s32.totalorder %s23, 0
      %p201 = por %p199, %p200
      %p202 = scmp.ne.s32.totalorder %s188, %s189
      %p203 = scmp.eq.s32.totalorder %s24, 1
      %p204 = por %p202, %p203
      %p206 = scmp.ne.s32.totalorder %s189, %s205
      %p207 = scmp.eq.s32.totalorder %s24, 0
      %p208 = por %p206, %p207
      %s209 = ssub.s32 %s18, %s25
      %p210 = scmp.eq.s32.totalorder %s209, 0
      %s212 = sadd.s32 %s211, 1
      %s213 = scalar_select %p210, %s211, %s212
      %p216 = pneg %p210
      %p217 = scmp.eq.s32.totalorder %s18, 1
      %p218 = por %p216, %p217
      %p219 = scmp.ne.s32.totalorder %s211, %s214
      %p220 = scmp.eq.s32.totalorder %s18, 0
      %p221 = por %p219, %p220
      %p222 = scmp.ne.s32.totalorder %s211, %s214
      %p223 = scmp.eq.s32.totalorder %s23, 1
      %p224 = por %p222, %p223
      %p225 = scmp.ne.s32.totalorder %s214, %s215
      %p226 = scmp.eq.s32.totalorder %s23, 0
      %p227 = por %p225, %p226
      %p228 = scmp.ne.s32.totalorder %s214, %s215
      %p229 = scmp.eq.s32.totalorder %s24, 1
      %p230 = por %p228, %p229
      %p232 = scmp.ne.s32.totalorder %s215, %s231
      %p233 = scmp.eq.s32.totalorder %s24, 0
      %p234 = por %p232, %p233
      %p235 = scmp.le.s32.totalorder 1, %s18
      %p236 = scmp.lt.s32.totalorder %s18, 3
      %p237 = pnand %p235, %p236
      %p238 = pneg %p237
      // Predicated region
      $region9: #{tpu_custom_call.1} parent=5 // pred_check
        _
      $region10: #{tpu_custom_call.1} parent=5 // pred_check_branch
        %240 = sbr.rel (%p237) target = $region12
      $region11: #{tpu_custom_call.1} parent=5 // pred_region
        %s241 = ssub.s32 %s18, 1
        // Predicated region
        $region13: #{tpu_custom_call.1} parent=11 // pred_check
          %p242 = pneg %p91
        $region14: #{tpu_custom_call.1} parent=11 // pred_check_branch
          %244 = sbr.rel (%p242) target = $region16
        $region15: #{tpu_custom_call.1} parent=11 // pred_region
          _
        $region16: #{tpu_custom_call.1} parent=11 // pred_fallthru
          _
        // Predicated region
        $region17: #{tpu_custom_call.1} parent=11 // pred_check
          %p245 = pneg %p112
        $region18: #{tpu_custom_call.1} parent=11 // pred_check_branch
          %247 = sbr.rel (%p245) target = $region20
        $region19: #{tpu_custom_call.1} parent=11 // pred_region
          _
        $region20: #{tpu_custom_call.1} parent=11 // pred_fallthru
          _
        // Predicated region
        $region21: #{tpu_custom_call.1} parent=11 // pred_check
          %p248 = pneg %p133
        $region22: #{tpu_custom_call.1} parent=11 // pred_check_branch
          %250 = sbr.rel (%p248) target = $region24
        $region23: #{tpu_custom_call.1} parent=11 // pred_region
          _
        $region24: #{tpu_custom_call.1} parent=11 // pred_fallthru
          _
        // Predicated region
        $region25: #{tpu_custom_call.1} parent=11 // pred_check
          %p251 = pneg %p154
        $region26: #{tpu_custom_call.1} parent=11 // pred_check_branch
          %253 = sbr.rel (%p251) target = $region28
        $region27: #{tpu_custom_call.1} parent=11 // pred_region
          _
        $region28: #{tpu_custom_call.1} parent=11 // pred_fallthru
          _
        // Predicated region
        $region29: #{tpu_custom_call.1} parent=11 // pred_check
          %p254 = pneg %p175
        $region30: #{tpu_custom_call.1} parent=11 // pred_check_branch
          %256 = sbr.rel (%p254) target = $region32
        $region31: #{tpu_custom_call.1} parent=11 // pred_region
          _
        $region32: #{tpu_custom_call.1} parent=11 // pred_fallthru
          _
      $region12: #{tpu_custom_call.1} parent=5 // pred_fallthru
        _
      %p257 = scmp.lt.s32.totalorder %s18, 2
      // Predicated region
      $region33: #{tpu_custom_call.1} parent=5 // pred_check
        %p258 = pneg %p257
      $region34: #{tpu_custom_call.1} parent=5 // pred_check_branch
        %260 = sbr.rel (%p258) target = $region36
      $region35: #{tpu_custom_call.1} parent=5 // pred_region
        // Predicated region
        $region37: #{tpu_custom_call.1} parent=35 // pred_check
          %p261 = pneg %p38
        $region38: #{tpu_custom_call.1} parent=35 // pred_check_branch
          %263 = sbr.rel (%p261) target = $region40
        $region39: #{tpu_custom_call.1} parent=35 // pred_region
          %p264 = scmp.lt.s32.totalorder %s18, 1
          %s265 = scalar_select %p264, %s18, 1
          %s266 = smul.addr %s265, 4
          %s267 = scalar_lea.vmem %s0, %s266
        $region40: #{tpu_custom_call.1} parent=35 // pred_fallthru
          _
        // Predicated region
        $region41: #{tpu_custom_call.1} parent=35 // pred_check
          %p268 = pneg %p64
        $region42: #{tpu_custom_call.1} parent=35 // pred_check_branch
          %270 = sbr.rel (%p268) target = $region44
        $region43: #{tpu_custom_call.1} parent=35 // pred_region
          %p271 = scmp.lt.s32.totalorder %s18, 1
          %s272 = scalar_select %p271, %s18, 1
          %s273 = smul.addr %s272, 4
          %s274 = scalar_lea.vmem %s1, %s273
        $region44: #{tpu_custom_call.1} parent=35 // pred_fallthru
          _
      $region36: #{tpu_custom_call.1} parent=5 // pred_fallthru
        _
      %p275 = scmp.le.s32.totalorder 1, %s18
      %p276 = scmp.lt.s32.totalorder %s18, 3
      %p277 = pnand %p275, %p276
      %p278 = pneg %p277
      // Predicated region
      $region45: #{tpu_custom_call.1} parent=5 // pred_check
        _
      $region46: #{tpu_custom_call.1} parent=5 // pred_check_branch
        %280 = sbr.rel (%p277) target = $region48
      $region47: #{tpu_custom_call.1} parent=5 // pred_region
        %s281 = ssub.s32 %s18, 1
        %p282 = scmp.lt.s32.totalorder %s23, 1
        %s283 = scalar_select %p282, %s23, 1
        %s284 = smul.addr %s283, 4
        %s285 = scalar_lea.vmem %s0, %s284
        %p286 = pneg %p44
        %p287 = pneg %p41
        %p288 = scmp.lt.s32.totalorder %s23, 1
        %s289 = scalar_select %p288, %s23, 1
        %s290 = smul.addr %s289, 4
        %s291 = scalar_lea.vmem %s1, %s290
        %p292 = pneg %p70
        %p293 = pneg %p67
        %p294 = pneg %p91
        %p295 = pneg %p88
        %p296 = pneg %p112
        %p297 = pneg %p109
        %p298 = pneg %p133
        %p299 = pneg %p130
        %p300 = pneg %p154
        %p301 = pneg %p151
        %p302 = pneg %p175
        %p303 = pneg %p172
        %p304 = pneg %p201
        %p305 = pneg %p198
        %s306 = sand.u32 %s188, 1
        %s307 = scalar_lea.sflag [#allocation3], %s306
        %s308 = sand.u32 %s188, 1
        %s309 = smul.addr %s308, 8
        %s310 = scalar_lea.vmem [#allocation2], %s309
        %p311 = pneg %p227
        %p312 = pneg %p224
        %p313 = scmp.lt.s32.totalorder %s23, 1
        %s314 = scalar_select %p313, %s23, 1
        %s315 = smul.addr %s314, 8
        %s316 = scalar_lea.vmem %s8, %s315
        %p317 = scmp.lt.s32.totalorder %s23, 1
        %s318 = scalar_select %p317, %s23, 1
        %s319 = smul.addr %s318, 4
        %s320 = scalar_lea.vmem %s0, %s319
        %p321 = scmp.lt.s32.totalorder %s23, 1
        %s322 = scalar_select %p321, %s23, 1
        %s323 = smul.addr %s322, 4
        %s324 = scalar_lea.vmem %s1, %s323
        %p325 = scmp.lt.s32.totalorder %s23, 1
        %s326 = scalar_select %p325, %s23, 1
        %s327 = smul.addr %s326, 8
        %s328 = scalar_lea.vmem %s8, %s327
        %v330 = vld [vmem:[%s320] sm:$0xf]
        %v331 = vld [vmem:[%s2] sm:$0xf]
        %v332 = vld [vmem:[%s2 + $0x4] sm:$0xf]
        %v333 = vld [vmem:[%s2 + $0x8] sm:$0xf]
        %v334 = vld [vmem:[%s2 + $0xc] sm:$0xf]
        %v335 = vld [vmem:[%s324] sm:$0xf]
        %v336 = vld [vmem:[%s3] sm:$0xf]
        %v337 = vld [vmem:[%s3 + $0x4] sm:$0xf]
        %v340 = vunpack.c.l.b16 %v336
        %v341 = vunpack.c.l.b16 %v337
        %v342 = vpack.c.b16 %v341, %v340
        %vm344 = vcmask 130048
        %v346 = vsel %vm344, %v335, 0
        %348 = vmatprep.subr.bf16.mxu0 0
        %349 = vmatpush1.bf16.msra.mxu0 0
        %350 = vmatprep.subr.bf16.mxu0 0
        %351 = vmatpush1.bf16.msra.mxu0 0
        %352 = vmatprep.subr.bf16.mxu0 0
        %353 = vmatpush1.bf16.msra.mxu0 0
        %354 = vmatprep.subr.bf16.mxu0 0
        %355 = vmatpush1.bf16.msra.mxu0 0
        %356 = vmatprep.subr.bf16.mxu0 0
        %357 = vmatpush1.bf16.msra.mxu0 0
        %358 = vmatprep.subr.bf16.mxu0 0
        %359 = vmatpush1.bf16.msra.mxu0 0
        %360 = vmatprep.subr.bf16.mxu0 0
        %361 = vmatpush1.bf16.msra.mxu0 0
        %362 = vmatprep.subr.bf16.mxu0 0
        %363 = vmatpush1.bf16.msra.mxu0 %v342
        %364 = vmatprep.subr.bf16.mxu0 0
        %365 = vmatpush2.bf16.msra.mxu0 0
        %366 = vmatprep.subr.bf16.mxu0 0
        %367 = vmatpush2.bf16.msra.mxu0 0
        %368 = vmatprep.subr.bf16.mxu0 0
        %369 = vmatpush2.bf16.msra.mxu0 0
        %370 = vmatprep.subr.bf16.mxu0 0
        %371 = vmatpush2.bf16.msra.mxu0 0
        %372 = vmatprep.subr.bf16.mxu0 0
        %373 = vmatpush2.bf16.msra.mxu0 0
        %374 = vmatprep.subr.bf16.mxu0 0
        %375 = vmatpush2.bf16.msra.mxu0 0
        %376 = vmatprep.subr.bf16.mxu0 0
        %377 = vmatpush2.bf16.msra.mxu0 0
        %378 = vmatprep.subr.bf16.mxu0 0
        %379 = vmatpush2.bf16.msra.mxu0 0
        %380 = vmatprep.mubr.bf16.mxu0 0
        %381 = vmatmul.mubr.bf16.gmra.mxu0 %v346
        %v382 = vpop.f32.mrf.mxu0
        %v383 = vadd.f32 0.0, %v382
        %v384 = vpop.f32.mrf.mxu0
        %v385 = vpop.f32.mrf.mxu0
        %v386 = vpop.f32.mrf.mxu0
        %387 = vdwg.mxu0
        %v392 = vunpack.c.l.b16 %v331
        %v393 = vunpack.c.l.b16 %v332
        %v394 = vunpack.c.l.b16 %v333
        %v395 = vunpack.c.l.b16 %v334
        %v396 = vpack.c.b16 %v393, %v392
        %v397 = vpack.c.b16 %v395, %v394
        %vm400 = vcmask 261120
        %v402 = vsel %vm400, %v330, 0
        %404 = vmatprep.subr.bf16.mxu0 0
        %405 = vmatpush1.bf16.msra.mxu0 0
        %406 = vmatprep.subr.bf16.mxu0 0
        %407 = vmatpush1.bf16.msra.mxu0 0
        %408 = vmatprep.subr.bf16.mxu0 0
        %409 = vmatpush1.bf16.msra.mxu0 0
        %410 = vmatprep.subr.bf16.mxu0 0
        %411 = vmatpush1.bf16.msra.mxu0 0
        %412 = vmatprep.subr.bf16.mxu0 0
        %413 = vmatpush1.bf16.msra.mxu0 0
        %414 = vmatprep.subr.bf16.mxu0 0
        %415 = vmatpush1.bf16.msra.mxu0 0
        %416 = vmatprep.subr.bf16.mxu0 0
        %417 = vmatpush1.bf16.msra.mxu0 %v397
        %418 = vmatprep.subr.bf16.mxu0 0
        %419 = vmatpush1.bf16.msra.mxu0 %v396
        %420 = vmatprep.subr.bf16.mxu0 0
        %421 = vmatpush2.bf16.msra.mxu0 0
        %422 = vmatprep.subr.bf16.mxu0 0
        %423 = vmatpush2.bf16.msra.mxu0 0
        %424 = vmatprep.subr.bf16.mxu0 0
        %425 = vmatpush2.bf16.msra.mxu0 0
        %426 = vmatprep.subr.bf16.mxu0 0
        %427 = vmatpush2.bf16.msra.mxu0 0
        %428 = vmatprep.subr.bf16.mxu0 0
        %429 = vmatpush2.bf16.msra.mxu0 0
        %430 = vmatprep.subr.bf16.mxu0 0
        %431 = vmatpush2.bf16.msra.mxu0 0
        %432 = vmatprep.subr.bf16.mxu0 0
        %433 = vmatpush2.bf16.msra.mxu0 0
        %434 = vmatprep.subr.bf16.mxu0 0
        %435 = vmatpush2.bf16.msra.mxu0 0
        %436 = vmatprep.mubr.bf16.mxu0 0
        %437 = vmatmul.mubr.bf16.gmra.mxu0 %v402
        %v438 = vpop.f32.mrf.mxu0
        %v439 = vadd.f32 %v383, %v438
        %v440 = vpop.f32.mrf.mxu0
        %v441 = vpop.f32.mrf.mxu0
        %v442 = vpop.f32.mrf.mxu0
        %443 = vdwg.mxu0
        %v444 = vld [vmem:[%s4] sm:$0x1]
        %v446 = vlaneseq
        %v447 = vshrl.u32 %v446, 7
        %v448 = vsub.s32 0, %v447
        %v449 = vrot.slane %v444, %v448
        %v451 = vadd.f32 %v439, %v449
        %v452 = vtanh.pop %v451
        %453 = vst.msk [vmem:[%s310] sm:$0xff] %vm344, %v452
        %v454 = vpack.c.bf16 %v452, %v452
        %v455 = vld [vmem:[%s5] sm:$0xf]
        %v456 = vld [vmem:[%s5 + $0x4] sm:$0xf]
        %v457 = vld [vmem:[%s6] sm:$0x1]
        %v459 = vlaneseq
        %v460 = vshrl.u32 %v459, 7
        %v461 = vsub.s32 0, %v460
        %v462 = vrot.slane %v457, %v461
        %v466 = vunpack.c.l.b16 %v455
        %v467 = vunpack.c.l.b16 %v456
        %v468 = vpack.c.b16 %v467, %v466
        %v471 = vsel %vm344, %v454, 0
        %473 = vmatprep.subr.bf16.mxu0 0
        %474 = vmatpush1.bf16.msra.mxu0 0
        %475 = vmatprep.subr.bf16.mxu0 0
        %476 = vmatpush1.bf16.msra.mxu0 0
        %477 = vmatprep.subr.bf16.mxu0 0
        %478 = vmatpush1.bf16.msra.mxu0 0
        %479 = vmatprep.subr.bf16.mxu0 0
        %480 = vmatpush1.bf16.msra.mxu0 0
        %481 = vmatprep.subr.bf16.mxu0 0
        %482 = vmatpush1.bf16.msra.mxu0 0
        %483 = vmatprep.subr.bf16.mxu0 0
        %484 = vmatpush1.bf16.msra.mxu0 0
        %485 = vmatprep.subr.bf16.mxu0 0
        %486 = vmatpush1.bf16.msra.mxu0 0
        %487 = vmatprep.subr.bf16.mxu0 0
        %488 = vmatpush1.bf16.msra.mxu0 %v468
        %489 = vmatprep.subr.bf16.mxu0 0
        %490 = vmatpush2.bf16.msra.mxu0 0
        %491 = vmatprep.subr.bf16.mxu0 0
        %492 = vmatpush2.bf16.msra.mxu0 0
        %493 = vmatprep.subr.bf16.mxu0 0
        %494 = vmatpush2.bf16.msra.mxu0 0
        %495 = vmatprep.subr.bf16.mxu0 0
        %496 = vmatpush2.bf16.msra.mxu0 0
        %497 = vmatprep.subr.bf16.mxu0 0
        %498 = vmatpush2.bf16.msra.mxu0 0
        %499 = vmatprep.subr.bf16.mxu0 0
        %500 = vmatpush2.bf16.msra.mxu0 0
        %501 = vmatprep.subr.bf16.mxu0 0
        %502 = vmatpush2.bf16.msra.mxu0 0
        %503 = vmatprep.subr.bf16.mxu0 0
        %504 = vmatpush2.bf16.msra.mxu0 0
        %505 = vmatprep.mubr.bf16.mxu0 0
        %506 = vmatmul.mubr.bf16.gmra.mxu0 %v471
        %v507 = vpop.f32.mrf.mxu0
        %v508 = vadd.f32 %v462, %v507
        %v509 = vpop.f32.mrf.mxu0
        %v510 = vpop.f32.mrf.mxu0
        %v511 = vpop.f32.mrf.mxu0
        %512 = vdwg.mxu0
        %vm513 = vcmask 64512
        %v514 = vsel %vm513, %v508, -inf
        %515 = vmax.xlane.f32.xlu0 %v514
        %v516 = vpop.xlane.xlu0 %515
        %v517 = vsub.f32 %v508, %v516
        %v518 = vmul.f32 %v517, 1.442695
        %v519 = vpow.pop %v518
        %v520 = vsel %vm513, %v519, 0.0
        %521 = vadd.xlane.f32.xlu0 %v520
        %v522 = vpop.xlane.xlu0 %521
        %v523 = vrcp.pop %v522
        %v524 = vmul.f32 %v519, %v523
        %525 = vst.msk [vmem:[%s328] sm:$0xff] %vm513, %v524
        %s526 = sand.u32 %s188, 1
        %s527 = scalar_lea.sflag [#allocation3], %s526
        %s528 = sand.u32 %s188, 1
        %s529 = smul.addr %s528, 8
        %s530 = scalar_lea.vmem [#allocation2], %s529
        %p531 = scmp.lt.s32.totalorder %s23, 1
        %s532 = scalar_select %p531, %s23, 1
        %s533 = smul.addr %s532, 8
        %s534 = scalar_lea.vmem %s8, %s533
        // Predicated region
        $region49: #{tpu_custom_call.1} parent=47 // pred_check
          %p535 = pneg %p198
        $region50: #{tpu_custom_call.1} parent=47 // pred_check_branch
          %537 = sbr.rel (%p535) target = $region52
        $region51: #{tpu_custom_call.1} parent=47 // pred_region
          %s539 = ssub.s32 128, 128
          %540 = vsyncadd %s527, %s539
          %s541 = smul.addr %s23, 128
          %s542 = scalar_lea.hbm %s7, %s541
          %s544 = sshll.u32 %s530, 4
          %s545 = int_to_ptr.vmem [resolvable:$true] %s544
          %547 = dma.vmem_to_hbm [thread:$0]  %s545, 128, %s542, %s527
        $region52: #{tpu_custom_call.1} parent=47 // pred_fallthru
          _
        // Predicated region
        $region53: #{tpu_custom_call.1} parent=47 // pred_check
          %p548 = pneg %p224
        $region54: #{tpu_custom_call.1} parent=47 // pred_check_branch
          %550 = sbr.rel (%p548) target = $region56
        $region55: #{tpu_custom_call.1} parent=47 // pred_region
          _
        $region56: #{tpu_custom_call.1} parent=47 // pred_fallthru
          _
      $region48: #{tpu_custom_call.1} parent=5 // pred_fallthru
        _
      %p551 = scmp.le.s32.totalorder 2, %s18
      // Predicated region
      $region57: #{tpu_custom_call.1} parent=5 // pred_check
        %p552 = pneg %p551
      $region58: #{tpu_custom_call.1} parent=5 // pred_check_branch
        %554 = sbr.rel (%p552) target = $region60
      $region59: #{tpu_custom_call.1} parent=5 // pred_region
        %s555 = ssub.s32 %s18, 2
        // Predicated region
        $region61: #{tpu_custom_call.1} parent=59 // pred_check
          %p556 = pneg %p204
        $region62: #{tpu_custom_call.1} parent=59 // pred_check_branch
          %558 = sbr.rel (%p556) target = $region64
        $region63: #{tpu_custom_call.1} parent=59 // pred_region
          %s559 = sand.u32 %s189, 1
          %s560 = scalar_lea.sflag [#allocation3], %s559
          %s561 = sand.u32 %s189, 1
          %s562 = smul.addr %s561, 8
          %s563 = scalar_lea.vmem [#allocation2], %s562
          %564 = dma.done %s560, 128
        $region64: #{tpu_custom_call.1} parent=59 // pred_fallthru
          _
        // Predicated region
        $region65: #{tpu_custom_call.1} parent=59 // pred_check
          %p565 = pneg %p230
        $region66: #{tpu_custom_call.1} parent=59 // pred_check_branch
          %567 = sbr.rel (%p565) target = $region68
        $region67: #{tpu_custom_call.1} parent=59 // pred_region
          %p568 = scmp.lt.s32.totalorder %s24, 1
          %s569 = scalar_select %p568, %s24, 1
          %s570 = smul.addr %s569, 8
          %s571 = scalar_lea.vmem %s8, %s570
        $region68: #{tpu_custom_call.1} parent=59 // pred_fallthru
          _
      $region60: #{tpu_custom_call.1} parent=5 // pred_fallthru
        _
    $region6: #{tpu_custom_call.1} parent=1 // loop_footer
      %s22 = sadd.s32 1, %s18
    $region7: #{tpu_custom_call.1} parent=1 // loop_footer_branch
      %17 = sbr.rel target = $region3
    $region8: #{tpu_custom_call.1} parent=1 // loop_exit
      _
    %572 = vsyncpa [#allocation3], 1
    %s573 = scalar_lea.sflag [#allocation3], 1
    %574 = vsyncpa %s573, 1

</llo_original>
